<compile_context>
chip_gen: v5e
topology: v5e:2x2
jax: 0.10.0
libtpu: 0.0.40
codegen_flags: <defaults>
</compile_context>

<pallas_src>
import functools

import jax
import jax.numpy as jnp
from jax.experimental import pallas as pl
from jax.experimental.pallas import tpu as pltpu


def _round_up(x, m):
    return ((x + m - 1) // m) * m


def _patch_recovery_kernel(a_ref, w_ref, b_ref, o_ref):
    # a_ref: (TM, K)     activation tile (K = C_in), streams over the grid
    # w_ref: (K, Np)     reshaped (and N-padded) ConvTranspose2d weight, resident
    # b_ref: (1, Np)     f32 bias broadcast per (C_out, ph, pw) position, resident
    # o_ref: (TM, Np)    output tile
    acc = jnp.dot(a_ref[...], w_ref[...], preferred_element_type=jnp.float32)
    o_ref[...] = (acc + b_ref[...]).astype(o_ref.dtype)


@functools.partial(jax.jit,
                   static_argnames=("img_size", "patch_size", "compute_dtype"))
def patch_recovery_2d(x, weight, bias, *, img_size, patch_size,
                      compute_dtype=None):
    """Forward pass of PatchRecovery2D.

    Args:
      x:      (B, C_in, H, W)  -- NCHW, matching the PyTorch module input.
      weight: (C_in, C_out, ph, pw) -- nn.ConvTranspose2d weight layout.
      bias:   (C_out,)
      img_size:   (Lat, Lon) target spatial size after center cropping.
      patch_size: (ph, pw).
      compute_dtype: optional dtype (e.g. jnp.bfloat16) for the GEMM operands;
        accumulation stays f32, bias is added in f32, output keeps x.dtype.

    Returns:
      (B, C_out, img_size[0], img_size[1])
    """
    B, C_in, H, W = x.shape
    ph, pw = patch_size
    C_out = weight.shape[1]

    M = B * H * W
    K = C_in
    N = C_out * ph * pw
    N_pad = _round_up(N, 128)          # lane-dense output stores
    out_dtype = x.dtype

    # ---- glue: layout to GEMM operands ------------------------------------
    # TODO(synk): this NCHW->NHWC transpose is an HBM round-trip of the
    # activations; reading x natively (transposed-LHS matmul per batch) would
    # remove it but needs 4-D block specs + in-kernel relayouts.
    a = jnp.transpose(x, (0, 2, 3, 1)).reshape(M, K)              # (M, K)
    w_mat = weight.reshape(K, N)                                   # (K, N)
    b_vec = jnp.broadcast_to(
        bias.astype(jnp.float32)[:, None], (C_out, ph * pw)).reshape(1, N)

    if N_pad != N:
        w_mat = jnp.pad(w_mat, ((0, 0), (0, N_pad - N)))
        b_vec = jnp.pad(b_vec, ((0, 0), (0, N_pad - N)))

    if compute_dtype is not None:
        a = a.astype(compute_dtype)
        w_mat = w_mat.astype(compute_dtype)

    in_bytes = jnp.dtype(a.dtype).itemsize
    out_bytes = jnp.dtype(out_dtype).itemsize

    # ---- M tile size: VMEM-budgeted, as large as possible, multiple of 8 ---
    # Budget covers: A tile + O tile (both double-buffered) + resident weight
    # (counted x2 to be conservative) + bias.  24 MiB fits the 32 MiB scoped
    # VMEM limit we request below on every chip generation.
    VMEM_BUDGET = 24 * 1024 * 1024
    fixed_bytes = 2 * K * N_pad * in_bytes + 2 * N_pad * 4
    row_bytes = 2 * (K * in_bytes + N_pad * out_bytes)
    tm_cap = max(8, (VMEM_BUDGET - fixed_bytes) // row_bytes)
    TM = int(min(2048, tm_cap, _round_up(M, 8)))
    TM = max(8, (TM // 8) * 8)
    grid_m = pl.cdiv(M, TM)

    cost = pl.CostEstimate(
        flops=2 * M * K * N_pad,
        transcendentals=0,
        bytes_accessed=(M * K * in_bytes + K * N_pad * in_bytes
                        + N_pad * 4 + M * N_pad * out_bytes),
    )

    # ---- hot path in Pallas: M-tiled, weight/bias resident ------------------
    out_flat = pl.pallas_call(
        _patch_recovery_kernel,
        out_shape=jax.ShapeDtypeStruct((M, N_pad), out_dtype),
        grid_spec=pltpu.PrefetchScalarGridSpec(
            num_scalar_prefetch=0,
            grid=(grid_m,),
            in_specs=[
                pl.BlockSpec((TM, K), lambda i: (i, 0)),        # streams
                pl.BlockSpec((K, N_pad), lambda i: (0, 0)),     # resident
                pl.BlockSpec((1, N_pad), lambda i: (0, 0)),     # resident
            ],
            out_specs=pl.BlockSpec((TM, N_pad), lambda i: (i, 0)),
        ),
        compiler_params=pltpu.CompilerParams(
            dimension_semantics=("parallel",),
            vmem_limit_bytes=32 * 1024 * 1024,
        ),
        cost_estimate=cost,
    )(a, w_mat, b_vec)

    # ---- glue: scatter patches back to the 2D image + center crop ----------
    # TODO(synk): the scatter/transpose below is XLA layout glue; fusing it into
    # the kernel (strided stores) would remove one more HBM round-trip, but the
    # NCHW target layout is lane-sparse (pw-wide runs), so it stays outside.
    Hp, Wp = H * ph, W * pw
    h_pad = Hp - img_size[0]
    w_pad = Wp - img_size[1]
    top, bottom = h_pad // 2, h_pad - h_pad // 2
    left, right = w_pad // 2, w_pad - w_pad // 2

    # Coarse crop at patch granularity BEFORE the big transpose so it only
    # touches surviving patches.
    h0, h1 = top // ph, (Hp - bottom - 1) // ph + 1
    w0, w1 = left // pw, (Wp - right - 1) // pw + 1

    out = out_flat[:, :N].reshape(B, H, W, C_out, ph, pw)
    out = out[:, h0:h1, w0:w1]
    out = jnp.transpose(out, (0, 3, 1, 4, 2, 5))
    out = out.reshape(B, C_out, (h1 - h0) * ph, (w1 - w0) * pw)

    # Fine crop inside the surviving patch rows/cols (same arithmetic as the
    # PyTorch slice).
    t_in = top - h0 * ph
    l_in = left - w0 * pw
    out = out[:, :, t_in:t_in + img_size[0], l_in:l_in + img_size[1]]
    return out


def _reference(x, weight, bias, img_size, patch_size):
    """Plain-JAX reference for non-overlapping ConvTranspose2d + center crop."""
    B, C_in, H, W = x.shape
    ph, pw = patch_size
    C_out = weight.shape[1]
    # o[b, co, h, i, w, j] = sum_ci x[b, ci, h, w] * weight[ci, co, i, j] + bias
    o = jnp.einsum('bchw,cdij->bdhiwj', x, weight)
    o = o + bias[None, :, None, None, None, None]
    o = o.reshape(B, C_out, H * ph, W * pw)
    Hp, Wp = H * ph, W * pw
    top = (Hp - img_size[0]) // 2
    left = (Wp - img_size[1]) // 2
    return o[:, :, top:top + img_size[0], left:left + img_size[1]]


if __name__ == "__main__":
    key = jax.random.PRNGKey(0)

    # ---------------- Test 1: N exactly lane-dense (C_out*ph*pw = 128) ------
    img_size = (12, 14)
    patch_size = (4, 4)
    in_chans, out_chans = 32, 8          # N = 8*4*4 = 128
    B, H, W = 2, 3, 4                    # conv output (12, 16) -> crop to (12, 14)

    kx, kw, kb = jax.random.split(key, 3)
    x = jax.random.normal(kx, (B, in_chans, H, W), dtype=jnp.float32)
    weight = 0.02 * jax.random.normal(
        kw, (in_chans, out_chans) + patch_size, dtype=jnp.float32)
    bias = 0.01 * jax.random.normal(kb, (out_chans,), dtype=jnp.float32)

    out = patch_recovery_2d(x, weight, bias,
                            img_size=img_size, patch_size=patch_size)
    out = jax.block_until_ready(out)
    assert out.shape == (B, out_chans) + img_size, out.shape
    ref = _reference(x, weight, bias, img_size, patch_size)
    assert jnp.allclose(out, ref, atol=1e-5, rtol=1e-5), "f32 mismatch vs reference"

    # bf16 activation/weight cast (f32 accumulation): looser tolerance.
    out_bf16 = patch_recovery_2d(x, weight, bias,
                                 img_size=img_size, patch_size=patch_size,
                                 compute_dtype=jnp.bfloat16)
    out_bf16 = jax.block_until_ready(out_bf16)
    assert jnp.max(jnp.abs(out_bf16 - ref)) < 5e-2, "bf16 mismatch vs reference"

    # ---------------- Test 2: N not a multiple of 128 (exercise N padding) --
    out_chans2 = 3                       # N = 3*4*4 = 48 -> padded to 128
    kw2, kb2 = jax.random.split(kw)
    weight2 = 0.02 * jax.random.normal(
        kw2, (in_chans, out_chans2) + patch_size, dtype=jnp.float32)
    bias2 = 0.01 * jax.random.normal(kb2, (out_chans2,), dtype=jnp.float32)

    out2 = patch_recovery_2d(x, weight2, bias2,
                             img_size=img_size, patch_size=patch_size)
    out2 = jax.block_until_ready(out2)
    assert out2.shape == (B, out_chans2) + img_size, out2.shape
    ref2 = _reference(x, weight2, bias2, img_size, patch_size)
    assert jnp.allclose(out2, ref2, atol=1e-5, rtol=1e-5), "padded-N mismatch"

    print("KERNEL_OK")
</pallas_src>

<mosaic_0001>
module attributes {stable_mosaic.version = 11 : i64} {
  func.func @_patch_recovery_kernel(%arg0: i32, %arg1: memref<24x32xf32, #tpu.memory_space<vmem>>, %arg2: memref<32x128xf32, #tpu.memory_space<vmem>>, %arg3: memref<1x128xf32, #tpu.memory_space<vmem>>, %arg4: memref<24x128xf32, #tpu.memory_space<vmem>>) attributes {dimension_semantics = [#tpu.dimension_semantics<parallel>], iteration_bounds = array<i64: 1>, scalar_prefetch = 0 : i64, scratch_operands = 0 : i64, tpu.core_type = #tpu.core_type<tc>, window_params = [{transform_indices = @transform_0, window_bounds = array<i64: 24, 32>}, {pipeline_mode = #tpu.pipeline_mode<synchronous>, transform_indices = @transform_1, window_bounds = array<i64: 32, 128>}, {pipeline_mode = #tpu.pipeline_mode<synchronous>, transform_indices = @transform_2, window_bounds = array<i64: 1, 128>}, {transform_indices = @transform_3, window_bounds = array<i64: 24, 128>}]} {
    %c0 = arith.constant 0 : index
    %c0_0 = arith.constant 0 : index
    %0 = vector.load %arg1[%c0, %c0_0] : memref<24x32xf32, #tpu.memory_space<vmem>>, vector<24x32xf32>
    %c0_1 = arith.constant 0 : index
    %c0_2 = arith.constant 0 : index
    %1 = vector.load %arg2[%c0_1, %c0_2] : memref<32x128xf32, #tpu.memory_space<vmem>>, vector<32x128xf32>
    %cst = arith.constant dense<0.000000e+00> : vector<24x128xf32>
    %2 = tpu.matmul %0, %1, %cst {dimension_numbers = #tpu.dot_dimension_numbers<[1], [0], [0], [1], [0, 0, 1, 1], [], []>} : vector<24x32xf32>, vector<32x128xf32>, vector<24x128xf32> -> vector<24x128xf32>
    %c0_3 = arith.constant 0 : index
    %c0_4 = arith.constant 0 : index
    %3 = vector.load %arg3[%c0_3, %c0_4] : memref<1x128xf32, #tpu.memory_space<vmem>>, vector<1x128xf32>
    %4 = vector.broadcast %3 : vector<1x128xf32> to vector<24x128xf32>
    %5 = arith.addf %2, %4 : vector<24x128xf32>
    %c0_5 = arith.constant 0 : index
    %c0_6 = arith.constant 0 : index
    %6 = vector.load %arg4[%c0_5, %c0_6] : memref<24x128xf32, #tpu.memory_space<vmem>>, vector<24x128xf32>
    tpu.vector_store %arg4[%c0_5, %c0_6], %5 {strides = array<i32>} : memref<24x128xf32, #tpu.memory_space<vmem>>, vector<24x128xf32>,
    return
  }
  func.func @transform_0(%arg0: i32) -> (i32, i32) {
    %c0_i32 = arith.constant 0 : i32
    %c0_i32_0 = arith.constant 0 : i32
    return %arg0, %c0_i32 : i32, i32
  }
  func.func @transform_1(%arg0: i32) -> (i32, i32) {
    %c0_i32 = arith.constant 0 : i32
    %c0_i32_0 = arith.constant 0 : i32
    %c0_i32_1 = arith.constant 0 : i32
    return %c0_i32, %c0_i32_0 : i32, i32
  }
  func.func @transform_2(%arg0: i32) -> (i32, i32) {
    %c0_i32 = arith.constant 0 : i32
    %c0_i32_0 = arith.constant 0 : i32
    %c0_i32_1 = arith.constant 0 : i32
    return %c0_i32, %c0_i32_0 : i32, i32
  }
  func.func @transform_3(%arg0: i32) -> (i32, i32) {
    %c0_i32 = arith.constant 0 : i32
    %c0_i32_0 = arith.constant 0 : i32
    return %arg0, %c0_i32 : i32, i32
  }
}

</mosaic_0001>

<llo_original>
// kernel: patch_recovery_2d.1
$region0: #{patch_recovery_2d.1}
  #allocation0 [shape = 'u32[]', space=smem, size = 0x4, offset = 0x4, fixed_abs, tag = 'smem constant byte address 0x4 - core index']
  #allocation1 [shape = 'u32[72,128]{1,0:T(1,128)}', space=vmem, size = 0x9000, scoped, tag = 'internal scratch']
  %s0 = inlined_call_operand.vmem [shape: f32[24,32], index: 0, kind: input, shape index: {}]
  %s1 = inlined_call_operand.vmem [shape: f32[32,128], index: 1, kind: input, shape index: {}]
  %s2 = inlined_call_operand.vmem [shape: f32[1,128], index: 2, kind: input, shape index: {}]
  %s3 = inlined_call_operand.vmem [shape: f32[24,128], index: 3, kind: output, shape index: {}]
  %s4 = sld [smem:[#allocation0]]
  $region22: #{patch_recovery_2d.1} parent=0
    _
  %s6 = ssub.s32 1, %s4
  %s7 = scalar_select 0, %s6, %s4
  // Predicated region
  $region2: #{patch_recovery_2d.1} parent=0 // pred_check
    _
  $region3: #{patch_recovery_2d.1} parent=0 // pred_check_branch
    %9 = sbr.rel (0) target = $region5
  $region4: #{patch_recovery_2d.1} parent=0 // pred_region
    _
  $region5: #{patch_recovery_2d.1} parent=0 // pred_fallthru
    _
  // Predicated region
  $region6: #{patch_recovery_2d.1} parent=0 // pred_check
    _
  $region7: #{patch_recovery_2d.1} parent=0 // pred_check_branch
    %11 = sbr.rel (0) target = $region9
  $region8: #{patch_recovery_2d.1} parent=0 // pred_region
    _
  $region9: #{patch_recovery_2d.1} parent=0 // pred_fallthru
    _
  // Predicated region
  $region10: #{patch_recovery_2d.1} parent=0 // pred_check
    _
  $region11: #{patch_recovery_2d.1} parent=0 // pred_check_branch
    %13 = sbr.rel (0) target = $region13
  $region12: #{patch_recovery_2d.1} parent=0 // pred_region
    _
  $region13: #{patch_recovery_2d.1} parent=0 // pred_fallthru
    _
  %v14 = vld [vmem:[%s0] sm:$0xff]
  %v15 = vld [vmem:[%s0 + $0x8] sm:$0xff]
  %v16 = vld [vmem:[%s0 + $0x10] sm:$0xff]
  %v17 = vld [vmem:[%s1] sm:$0xff]
  %v18 = vld [vmem:[%s1 + $0x8] sm:$0xff]
  %v19 = vld [vmem:[%s1 + $0x10] sm:$0xff]
  %v20 = vld [vmem:[%s1 + $0x18] sm:$0xff]
  %v21 = vld [vmem:[%s2] sm:$0x1]
  %v23 = vperm.slane %v21, 0
  %vm25 = vcmask 261120
  %v27 = vsel %vm25, %v14, 0
  %v30 = vsel %vm25, %v15, 0
  %v33 = vsel %vm25, %v16, 0
  %35 = vmatpush.msra.mxu0 0.0
  %36 = vmatpush.msra.mxu0 0.0
  %37 = vmatpush.msra.mxu0 0.0
  %38 = vmatpush.msra.mxu0 0.0
  %39 = vmatpush.msra.mxu0 0.0
  %40 = vmatpush.msra.mxu0 0.0
  %41 = vmatpush.msra.mxu0 0.0
  %42 = vmatpush.msra.mxu0 0.0
  %43 = vmatpush.msra.mxu0 0.0
  %44 = vmatpush.msra.mxu0 0.0
  %45 = vmatpush.msra.mxu0 0.0
  %46 = vmatpush.msra.mxu0 0.0
  %47 = vmatpush.msra.mxu0 %v20
  %48 = vmatpush.msra.mxu0 %v19
  %49 = vmatpush.msra.mxu0 %v18
  %50 = vmatpush.msra.mxu0 %v17
  %51 = vmatmul.f32.gmra.mxu0 %v27
  %v52 = vpop.f32.mrf.mxu0
  %v53 = vadd.f32 %v23, %v52
  %54 = vmatmul.f32.gmra.mxu0 %v30
  %v55 = vpop.f32.mrf.mxu0
  %v56 = vadd.f32 %v23, %v55
  %57 = vmatmul.f32.gmra.mxu0 %v33
  %v58 = vpop.f32.mrf.mxu0
  %v59 = vadd.f32 %v23, %v58
  %60 = vdwg.mxu0
  %61 = vst [vmem:[%s3] sm:$0xff] %v53
  %62 = vst [vmem:[%s3 + $0x8] sm:$0xff] %v56
  %63 = vst [vmem:[%s3 + $0x10] sm:$0xff] %v59
  // Predicated region
  $region14: #{patch_recovery_2d.1} parent=0 // pred_check
    _
  $region15: #{patch_recovery_2d.1} parent=0 // pred_check_branch
    %65 = sbr.rel (0) target = $region17
  $region16: #{patch_recovery_2d.1} parent=0 // pred_region
    _
  $region17: #{patch_recovery_2d.1} parent=0 // pred_fallthru
    _
  // Predicated region
  $region18: #{patch_recovery_2d.1} parent=0 // pred_check
    _
  $region19: #{patch_recovery_2d.1} parent=0 // pred_check_branch
    %67 = sbr.rel (0) target = $region21
  $region20: #{patch_recovery_2d.1} parent=0 // pred_region
    _
  $region21: #{patch_recovery_2d.1} parent=0 // pred_fallthru
    _

</llo_original>
